<compile_context>
chip_gen: v7x
topology: tpu7x:2x2x1
jax: 0.10.0
libtpu: 0.0.40
codegen_flags: <defaults>
</compile_context>

<pallas_src>
import jax
import jax.numpy as jnp
from jax.experimental import pallas as pl
from jax.experimental.pallas import tpu as pltpu

EPS = 1e-8  # gLN epsilon (common Conv-TasNet choice)


# --------------------------------------------------------------------------
# Packed per-layer parameter layout: rows of the (L, ROWS, C) tensor.
# --------------------------------------------------------------------------
def _vec_rows(K):
    return ((9 + K) + 7) // 8 * 8          # pad row count to a multiple of 8


def _row_idx(K):
    return {
        'b1': 0, 'g1': 1, 'be1': 2,        # 1x1 conv bias, gLN1 gamma/beta
        'wd': 3,                           # K depthwise taps at rows 3 .. 3+K-1
        'bd': 3 + K, 'g2': 4 + K, 'be2': 5 + K,
        'bsc': 6 + K,                      # output 1x1 conv bias (C == H here)
        'a1': 7 + K, 'a2': 8 + K,          # PReLU alphas (replicated over C)
    }


# --------------------------------------------------------------------------
# Fused TCN + concatNet stack: grid = (layer,), batch folded into the block.
# Activation resident in the output VMEM block across all layers; weights
# resident in VMEM for the whole call.
# --------------------------------------------------------------------------
def _make_stack_kernel(B, T, C, K, pad_max, final_relu):
    r = _row_idx(K)
    inv_n = 1.0 / float(T * C)
    kc = (K - 1) // 2                       # center tap (K is odd: 3)

    def kernel(dil_ref,                     # (L,) int32 SMEM (scalar prefetch)
               x_ref, w1_ref, wsc_ref, vec_ref,
               o_ref,                       # (B, T, C) residual stream, VMEM-resident
               ypad_ref):                   # (B, T + 2*pad_max, C) f32 scratch
        l = pl.program_id(0)

        @pl.when(l == 0)
        def _init():
            o_ref[...] = x_ref[...]                       # start residual chain
            ypad_ref[...] = jnp.zeros_like(ypad_ref)      # zero halos once

        x3 = o_ref[...]                                   # (B, T, C) f32
        w1 = w1_ref[l]                                    # (C, C) bf16 (resident)
        wsc = wsc_ref[l]                                  # (C, C) bf16 (resident)
        vec = vec_ref[l]                                  # (ROWS, C) f32 packed params

        def gln(z, g_row, b_row):
            # two-stage reduction: lane row-sums first, tiny sublane reduce last
            s = jnp.sum(z, axis=-1, keepdims=True)        # (B, T, 1)
            sq = jnp.sum(z * z, axis=-1, keepdims=True)   # (B, T, 1)
            m = jnp.sum(s, axis=1, keepdims=True) * inv_n         # (B, 1, 1)
            ex2 = jnp.sum(sq, axis=1, keepdims=True) * inv_n      # (B, 1, 1)
            v = jnp.maximum(ex2 - m * m, 0.0)
            return vec[g_row:g_row + 1] * (z - m) * jax.lax.rsqrt(v + EPS) \
                + vec[b_row:b_row + 1]

        # ---- 1x1 conv (MXU, bf16 in / f32 acc, M = B*T) + PReLU + gLN -----
        x2 = x3.reshape(B * T, C)
        y2 = jnp.dot(x2.astype(jnp.bfloat16), w1,
                     preferred_element_type=jnp.float32) + vec[r['b1']:r['b1'] + 1]
        y2 = jnp.where(y2 >= 0.0, y2, vec[r['a1']:r['a1'] + 1] * y2)
        y = gln(y2.reshape(B, T, C), r['g1'], r['be1'])

        # ---- dilated depthwise conv ('same', non-causal) -------------------
        ypad_ref[:, pad_max:pad_max + T, :] = y
        dil = dil_ref[l]
        pad = (dil * (K - 1)) // 2
        # bias folded into acc init; center tap straight from the resident y
        acc = y * vec[r['wd'] + kc:r['wd'] + kc + 1] + vec[r['bd']:r['bd'] + 1]
        for k in range(K):                                # K small & static (3)
            if k == kc:
                continue
            start = pad_max - pad + k * dil
            acc = acc + ypad_ref[:, pl.ds(start, T), :] * vec[r['wd'] + k:r['wd'] + k + 1]

        # ---- PReLU + gLN ----------------------------------------------------
        z = jnp.where(acc >= 0.0, acc, vec[r['a2']:r['a2'] + 1] * acc)
        z = gln(z, r['g2'], r['be2'])

        # ---- 1x1 conv back + residual ----------------------------------------
        out2 = jnp.dot(z.reshape(B * T, C).astype(jnp.bfloat16), wsc,
                       preferred_element_type=jnp.float32) + vec[r['bsc']:r['bsc'] + 1]
        res = x3 + out2.reshape(B, T, C)

        last = pl.num_programs(0) - 1
        if final_relu:                                    # concatNet's trailing nn.ReLU
            @pl.when(l == last)
            def _store_last():
                o_ref[...] = jnp.maximum(res, 0.0)

            @pl.when(l < last)
            def _store():
                o_ref[...] = res
        else:
            o_ref[...] = res

    return kernel


def tcn_stack_forward(x, params, *, final_relu):
    """Apply a stack of Conv1D_Blocks.  x: (B, T, C) channels-last, f32."""
    B, T, C = x.shape
    L = params['w1'].shape[0]
    K = params['K']
    rows = _vec_rows(K)
    pad_max = (params['max_dilation'] * (K - 1)) // 2
    kernel = _make_stack_kernel(B, T, C, K, pad_max, final_relu)

    grid_spec = pltpu.PrefetchScalarGridSpec(
        num_scalar_prefetch=1,
        grid=(L,),
        in_specs=[
            # activation: single full block, resident across all layers
            pl.BlockSpec((B, T, C), lambda l, d: (0, 0, 0)),
            # weights: full-tensor blocks, constant index_map -> one HBM read per call
            pl.BlockSpec((L, C, C), lambda l, d: (0, 0, 0)),       # w1  (bf16)
            pl.BlockSpec((L, C, C), lambda l, d: (0, 0, 0)),       # wsc (bf16)
            pl.BlockSpec((L, rows, C), lambda l, d: (0, 0, 0)),    # packed vectors
        ],
        out_specs=pl.BlockSpec((B, T, C), lambda l, d: (0, 0, 0)),
        scratch_shapes=[pltpu.VMEM((B, T + 2 * pad_max, C), jnp.float32)],
    )
    return pl.pallas_call(
        kernel,
        out_shape=jax.ShapeDtypeStruct((B, T, C), jnp.float32),
        grid_spec=grid_spec,
        compiler_params=pltpu.CompilerParams(
            dimension_semantics=("arbitrary",),          # layer chain is sequential
            vmem_limit_bytes=48 * 1024 * 1024),          # ~19 MiB actual; < v7x 64 MiB
    )(params['dil'], x, params['w1'], params['wsc'], params['vec'])


def fuse_stack_params(p_a, p_b):
    """Concatenate two Conv1D_Block stacks into one fused layer list."""
    assert p_a['K'] == p_b['K']
    return {
        'w1': jnp.concatenate([p_a['w1'], p_b['w1']], axis=0),
        'wsc': jnp.concatenate([p_a['wsc'], p_b['wsc']], axis=0),
        'vec': jnp.concatenate([p_a['vec'], p_b['vec']], axis=0),
        'dil': jnp.concatenate([p_a['dil'], p_b['dil']], axis=0),
        'K': p_a['K'],
        'max_dilation': max(p_a['max_dilation'], p_b['max_dilation']),
    }


# --------------------------------------------------------------------------
# Encoder: Conv1d(1, C, ksize, stride) + ReLU.  Framing in the wrapper
# (relies on ksize == 2 * stride), one bf16 MXU matmul over all B*Tf frames.
# --------------------------------------------------------------------------
def _encoder_kernel(f_ref, w_ref, b_ref, o_ref):
    y = jnp.dot(f_ref[...].astype(jnp.bfloat16), w_ref[...],
                preferred_element_type=jnp.float32) + b_ref[...]
    o_ref[...] = jnp.maximum(y, 0.0)


def encoder_forward(audio, params):
    """audio: (B, 1, T_audio) -> (B, Tf, C) channels-last encoder features."""
    w, b, stride = params['w'], params['b'], params['stride']
    ksize, C = w.shape
    assert ksize == 2 * stride
    B = audio.shape[0]
    a = audio[:, 0, :]
    Tf = (a.shape[1] - ksize) // stride + 1
    a = a[:, : (Tf + 1) * stride]
    rs = a.reshape(B, Tf + 1, stride)
    frames = jnp.concatenate([rs[:, :-1, :], rs[:, 1:, :]], axis=-1)  # (B, Tf, ksize)
    frames2 = frames.reshape(B * Tf, ksize)

    out = pl.pallas_call(
        _encoder_kernel,
        out_shape=jax.ShapeDtypeStruct((B * Tf, C), jnp.float32),
    )(frames2, w, b)
    return out.reshape(B, Tf, C)


# --------------------------------------------------------------------------
# generate_mask (Conv1d(C, C, 3, pad=1)) + ReLU + (enc * mask) + decoder
# per-frame matmul, all fused in ONE pallas_call.  Overlap-add of the
# (T, ksize) frames (pure data movement, ksize == 2*stride) in the wrapper.
# --------------------------------------------------------------------------
def _make_mask_dec_kernel(B, T, C, K, ksize):
    kc = K // 2

    def kernel(x_ref, enc_ref, wm_ref, bm_ref, wd_ref, o_ref, xpad_ref):
        xpad_ref[...] = jnp.zeros_like(xpad_ref)
        x3 = x_ref[...]                                    # (B, T, C)
        xpad_ref[:, kc:kc + T, :] = x3

        # mask conv: center tap from the resident value, neighbors from the halo pad
        x2 = x3.reshape(B * T, C).astype(jnp.bfloat16)
        acc = jnp.dot(x2, wm_ref[kc], preferred_element_type=jnp.float32)
        for k in range(K):
            if k == kc:
                continue
            xk = xpad_ref[:, k:k + T, :].reshape(B * T, C).astype(jnp.bfloat16)
            acc = acc + jnp.dot(xk, wm_ref[k], preferred_element_type=jnp.float32)
        mask = jnp.maximum(acc + bm_ref[...], 0.0)          # (B*T, C) = relu(conv(x))

        dec_in = mask * enc_ref[...].reshape(B * T, C)      # encoder_output * mask
        y = jnp.dot(dec_in.astype(jnp.bfloat16), wd_ref[...],
                    preferred_element_type=jnp.float32)     # (B*T, ksize)
        o_ref[...] = y.reshape(B, T, ksize)

    return kernel


def mask_decode_forward(x, enc, params_mask, params_dec):
    B, T, C = x.shape
    wm, bm = params_mask['w'], params_mask['b']             # (K, C, C) bf16, (1, C) f32
    K = wm.shape[0]
    wd, bias, stride = params_dec['w'], params_dec['b'], params_dec['stride']
    ksize = wd.shape[1]
    assert ksize == 2 * stride

    y = pl.pallas_call(
        _make_mask_dec_kernel(B, T, C, K, ksize),
        out_shape=jax.ShapeDtypeStruct((B, T, ksize), jnp.float32),
        scratch_shapes=[pltpu.VMEM((B, T + K - 1, C), jnp.float32)],
    )(x, enc, wm, bm, wd)

    # overlap-add (ksize == 2*stride): pure data movement on a tiny array
    ya, yb = y[:, :, :stride], y[:, :, stride:]
    zpad = jnp.zeros((B, 1, stride), y.dtype)
    chunks = jnp.concatenate([ya, zpad], axis=1) + jnp.concatenate([zpad, yb], axis=1)
    return chunks.reshape(B, 1, (T + 1) * stride) + bias


# --------------------------------------------------------------------------
# Full AVModel forward (channels-last internally; no per-layer transposes).
# --------------------------------------------------------------------------
def avmodel_forward(audio, params):
    enc = encoder_forward(audio, params['encoder'])                  # (B, Tf, C)
    stack = fuse_stack_params(params['tcn'], params['concat'])      # 8 + 24 fused layers
    h = tcn_stack_forward(enc, stack, final_relu=True)              # TCN + concatNet (+ReLU)
    return mask_decode_forward(h, enc, params['mask'], params['decoder'])  # (B, 1, T_audio)


# --------------------------------------------------------------------------
# Synthetic parameter construction (deterministic, matches module shapes).
# --------------------------------------------------------------------------
def init_stack_params(key, num_repeats, num_blocks, C, K):
    L = num_repeats * num_blocks
    rows, r = _vec_rows(K), _row_idx(K)
    k1, k2, k3 = jax.random.split(key, 3)
    w1 = (0.08 * jax.random.normal(k1, (L, C, C), jnp.float32)).astype(jnp.bfloat16)
    wsc = (0.08 * jax.random.normal(k2, (L, C, C), jnp.float32)).astype(jnp.bfloat16)
    wd = 0.2 * jax.random.normal(k3, (L, K, C), jnp.float32)
    vec = jnp.zeros((L, rows, C), jnp.float32)
    vec = vec.at[:, r['g1'], :].set(1.0)                   # gLN1 gamma
    vec = vec.at[:, r['wd']:r['wd'] + K, :].set(wd)        # depthwise taps
    vec = vec.at[:, r['g2'], :].set(1.0)                   # gLN2 gamma
    vec = vec.at[:, r['a1'], :].set(0.25)                  # nn.PReLU default alpha
    vec = vec.at[:, r['a2'], :].set(0.25)
    dil = jnp.asarray([2 ** (i % num_blocks) for i in range(L)], jnp.int32)
    return {'w1': w1, 'wsc': wsc, 'vec': vec, 'dil': dil,
            'K': K, 'max_dilation': 2 ** (num_blocks - 1)}


def init_avmodel_params(key, *, C, enc_kernel, enc_stride, tcn_cfg, concat_cfg, K):
    ks = jax.random.split(key, 5)
    return {
        'encoder': {'w': (0.1 * jax.random.normal(ks[0], (enc_kernel, C), jnp.float32)
                          ).astype(jnp.bfloat16),
                    'b': jnp.zeros((1, C), jnp.float32),
                    'stride': enc_stride},
        'tcn': init_stack_params(ks[1], tcn_cfg[0], tcn_cfg[1], C, K),
        'concat': init_stack_params(ks[2], concat_cfg[0], concat_cfg[1], C, K),
        'mask': {'w': (0.05 * jax.random.normal(ks[3], (K, C, C), jnp.float32)
                       ).astype(jnp.bfloat16),
                 'b': jnp.zeros((1, C), jnp.float32)},
        'decoder': {'w': (0.05 * jax.random.normal(ks[4], (C, enc_kernel), jnp.float32)
                          ).astype(jnp.bfloat16),
                    'b': jnp.zeros((), jnp.float32),
                    'stride': enc_stride},
    }


if __name__ == "__main__":
    B = 2
    C = 256                                  # AVModel channel width (lane-dense: 2x128)
    enc_kernel, enc_stride = 40, 20
    Tf = 64                                  # small number of encoder frames for the demo
    T_audio = (Tf - 1) * enc_stride + enc_kernel   # 1300 samples

    key = jax.random.PRNGKey(0)
    k_x, k_p = jax.random.split(key)
    audio = jax.random.normal(k_x, (B, 1, T_audio), jnp.float32)
    params = init_avmodel_params(k_p, C=C, enc_kernel=enc_kernel, enc_stride=enc_stride,
                                 tcn_cfg=(1, 8), concat_cfg=(3, 8), K=3)

    out = avmodel_forward(audio, params)
    out = jax.block_until_ready(out)
    assert out.shape == (B, 1, T_audio), out.shape
    assert bool(jnp.all(jnp.isfinite(out)))
    print("KERNEL_OK")
</pallas_src>

<mosaic_0001>
module attributes {stable_mosaic.version = 11 : i64} {
  func.func @_encoder_kernel(%arg0: memref<128x40xf32, #tpu.memory_space<vmem>>, %arg1: memref<40x256xbf16, #tpu.memory_space<vmem>>, %arg2: memref<1x256xf32, #tpu.memory_space<vmem>>, %arg3: memref<128x256xf32, #tpu.memory_space<vmem>>) attributes {dimension_semantics = [], scalar_prefetch = 0 : i64, scratch_operands = 0 : i64, tpu.core_type = #tpu.core_type<tc>} {
    %c0 = arith.constant 0 : index
    %c0_0 = arith.constant 0 : index
    %0 = vector.load %arg0[%c0, %c0_0] : memref<128x40xf32, #tpu.memory_space<vmem>>, vector<128x40xf32>
    %1 = arith.truncf %0 : vector<128x40xf32> to vector<128x40xbf16>
    %c0_1 = arith.constant 0 : index
    %c0_2 = arith.constant 0 : index
    %2 = vector.load %arg1[%c0_1, %c0_2] : memref<40x256xbf16, #tpu.memory_space<vmem>>, vector<40x256xbf16>
    %cst = arith.constant dense<0.000000e+00> : vector<128x256xf32>
    %3 = tpu.matmul %1, %2, %cst {dimension_numbers = #tpu.dot_dimension_numbers<[1], [0], [0], [1], [0, 0, 1, 1], [], []>} : vector<128x40xbf16>, vector<40x256xbf16>, vector<128x256xf32> -> vector<128x256xf32>
    %c0_3 = arith.constant 0 : index
    %c0_4 = arith.constant 0 : index
    %4 = vector.load %arg2[%c0_3, %c0_4] : memref<1x256xf32, #tpu.memory_space<vmem>>, vector<1x256xf32>
    %5 = vector.broadcast %4 : vector<1x256xf32> to vector<128x256xf32>
    %6 = arith.addf %3, %5 : vector<128x256xf32>
    %cst_5 = arith.constant 0.000000e+00 : f32
    %7 = vector.broadcast %cst_5 : f32 to vector<128x256xf32>
    %8 = arith.maximumf %6, %7 : vector<128x256xf32>
    %c0_6 = arith.constant 0 : index
    %c0_7 = arith.constant 0 : index
    %9 = vector.load %arg3[%c0_6, %c0_7] : memref<128x256xf32, #tpu.memory_space<vmem>>, vector<128x256xf32>
    tpu.vector_store %arg3[%c0_6, %c0_7], %8 {strides = array<i32>} : memref<128x256xf32, #tpu.memory_space<vmem>>, vector<128x256xf32>,
    return
  }
}

</mosaic_0001>

<llo_original>
// kernel: tpu_custom_call.1
$region0: #{tpu_custom_call.1}
  #allocation0 [shape = 'u32[]', space=smem, size = 0x4, offset = 0x4, fixed_abs, tag = 'smem constant byte address 0x4 - core index']
  #allocation1 [shape = 'u32[144,128]{1,0:T(1,128)}', space=vmem, size = 0x12000, scoped, tag = 'internal scratch']
  %s0 = inlined_call_operand.vmem [shape: f32[128,40], index: 0, kind: input, shape index: {}]
  %s1 = inlined_call_operand.vmem [shape: bf16[40,256], index: 1, kind: input, shape index: {}]
  %s2 = inlined_call_operand.vmem [shape: f32[1,256], index: 2, kind: input, shape index: {}]
  %s3 = inlined_call_operand.hbm [shape: f32[128,256], index: 3, kind: output, shape index: {}]
  %s4 = sld [smem:[#allocation0]]
  $region22: #{tpu_custom_call.1} parent=0
    _
  %s6 = ssub.s32 1, %s4
  %s7 = scalar_select 0, %s6, %s4
  $region1: #{tpu_custom_call.1} parent=0
    #allocation2 [shape = 'u8[131072]{0}', space=vmem, size = 0x20000, scoped, tag = 'output window, operand 0, single buffered']
    #allocation3 [shape = 's32[1]{0}', space=sflag, size = 0x4, scoped, tag = 'scoped memory for tpu_custom_call.1']
    %8 = vsyncpa [#allocation3], 0
    // Predicated region
    $region2: #{tpu_custom_call.1} parent=1 // pred_check
      _
    $region3: #{tpu_custom_call.1} parent=1 // pred_check_branch
      %10 = sbr.rel (0) target = $region5
    $region4: #{tpu_custom_call.1} parent=1 // pred_region
      _
    $region5: #{tpu_custom_call.1} parent=1 // pred_fallthru
      _
    // Predicated region
    $region6: #{tpu_custom_call.1} parent=1 // pred_check
      _
    $region7: #{tpu_custom_call.1} parent=1 // pred_check_branch
      %12 = sbr.rel (0) target = $region9
    $region8: #{tpu_custom_call.1} parent=1 // pred_region
      _
    $region9: #{tpu_custom_call.1} parent=1 // pred_fallthru
      _
    // Predicated region
    $region10: #{tpu_custom_call.1} parent=1 // pred_check
      _
    $region11: #{tpu_custom_call.1} parent=1 // pred_check_branch
      %14 = sbr.rel (0) target = $region13
    $region12: #{tpu_custom_call.1} parent=1 // pred_region
      _
    $region13: #{tpu_custom_call.1} parent=1 // pred_fallthru
      _
    %v16 = vld [vmem:[%s0] sm:$0xff]
    %v17 = vld [vmem:[%s0 + $0x8] sm:$0xff]
    %v18 = vld [vmem:[%s0 + $0x10] sm:$0xff]
    %v19 = vld [vmem:[%s0 + $0x18] sm:$0xff]
    %v20 = vld [vmem:[%s0 + $0x20] sm:$0xff]
    %v21 = vld [vmem:[%s0 + $0x28] sm:$0xff]
    %v22 = vld [vmem:[%s0 + $0x30] sm:$0xff]
    %v23 = vld [vmem:[%s0 + $0x38] sm:$0xff]
    %v24 = vld [vmem:[%s0 + $0x40] sm:$0xff]
    %v25 = vld [vmem:[%s0 + $0x48] sm:$0xff]
    %v26 = vld [vmem:[%s0 + $0x50] sm:$0xff]
    %v27 = vld [vmem:[%s0 + $0x58] sm:$0xff]
    %v28 = vld [vmem:[%s0 + $0x60] sm:$0xff]
    %v29 = vld [vmem:[%s0 + $0x68] sm:$0xff]
    %v30 = vld [vmem:[%s0 + $0x70] sm:$0xff]
    %v31 = vld [vmem:[%s0 + $0x78] sm:$0xff]
    %v32 = vpack.c.bf16 %v17, %v16
    %v33 = vpack.c.bf16 %v19, %v18
    %v34 = vpack.c.bf16 %v21, %v20
    %v35 = vpack.c.bf16 %v23, %v22
    %v36 = vpack.c.bf16 %v25, %v24
    %v37 = vpack.c.bf16 %v27, %v26
    %v38 = vpack.c.bf16 %v29, %v28
    %v39 = vpack.c.bf16 %v31, %v30
    %v40 = vld [vmem:[%s1] sm:$0xff]
    %v41 = vld [vmem:[%s1 + $0x8] sm:$0xff]
    %v42 = vld [vmem:[%s1 + $0x10] sm:$0xff]
    %v43 = vld [vmem:[%s1 + $0x18] sm:$0xff]
    %v44 = vld [vmem:[%s1 + $0x20] sm:$0xff]
    %v45 = vld [vmem:[%s2] sm:$0x3]
    %v47 = vlaneseq
    %v48 = vshrl.u32 %v47, 7
    %v49 = vsub.s32 0, %v48
    %v50 = vrot.slane %v45, %v49
    %v51 = vlaneseq
    %v52 = vshrl.u32 %v51, 7
    %v53 = vsub.s32 1, %v52
    %v54 = vrot.slane %v45, %v53
    %v62 = vunpack.c.l.b16 %v40
    %v63 = vunpack.c.h.b16 %v40
    %v64 = vunpack.c.l.b16 %v41
    %v65 = vunpack.c.h.b16 %v41
    %v66 = vunpack.c.l.b16 %v42
    %v67 = vunpack.c.h.b16 %v42
    %v68 = vunpack.c.l.b16 %v43
    %v69 = vunpack.c.h.b16 %v43
    %v70 = vunpack.c.l.b16 %v44
    %v71 = vunpack.c.h.b16 %v44
    %v72 = vpack.c.b16 %v64, %v62
    %v73 = vpack.c.b16 %v65, %v63
    %v74 = vpack.c.b16 %v68, %v66
    %v75 = vpack.c.b16 %v69, %v67
    %v76 = vpack.c.b16 %v70, %v70
    %v77 = vpack.c.b16 %v71, %v71
    %vm82 = vcmask 326656
    %v84 = vsel %vm82, %v32, 0
    %v87 = vsel %vm82, %v33, 0
    %v90 = vsel %vm82, %v34, 0
    %v93 = vsel %vm82, %v35, 0
    %v96 = vsel %vm82, %v36, 0
    %v99 = vsel %vm82, %v37, 0
    %v102 = vsel %vm82, %v38, 0
    %v105 = vsel %vm82, %v39, 0
    %vm107 = vcmask 1043456
    %v109 = vsel %vm107, %v76, 0
    %v112 = vsel %vm107, %v77, 0
    %114 = vmatprep.subr.bf16.mxu0 %v73
    %115 = vmatpush1.bf16.msra.mxu0 %v72
    %116 = vmatprep.subr.bf16.mxu0 %v75
    %117 = vmatpush1.bf16.msra.mxu0 %v74
    %118 = vmatprep.subr.bf16.mxu0 %v112
    %119 = vmatpush1.bf16.msra.mxu0 %v109
    %120 = vmatprep.subr.bf16.mxu0 0
    %121 = vmatpush1.bf16.msra.mxu0 0
    %122 = vmatprep.subr.bf16.mxu0 0
    %123 = vmatpush1.bf16.msra.mxu0 0
    %124 = vmatprep.subr.bf16.mxu0 0
    %125 = vmatpush1.bf16.msra.mxu0 0
    %126 = vmatprep.subr.bf16.mxu0 0
    %127 = vmatpush1.bf16.msra.mxu0 0
    %128 = vmatprep.subr.bf16.mxu0 0
    %129 = vmatpush1.bf16.msra.mxu0 0
    %130 = vmatprep.subr.bf16.mxu0 0
    %131 = vmatpush1.bf16.msra.mxu0 0
    %132 = vmatprep.subr.bf16.mxu0 0
    %133 = vmatpush1.bf16.msra.mxu0 0
    %134 = vmatprep.subr.bf16.mxu0 0
    %135 = vmatpush1.bf16.msra.mxu0 0
    %136 = vmatprep.subr.bf16.mxu0 0
    %137 = vmatpush1.bf16.msra.mxu0 0
    %138 = vmatprep.subr.bf16.mxu0 0
    %139 = vmatpush1.bf16.msra.mxu0 0
    %140 = vmatprep.subr.bf16.mxu0 0
    %141 = vmatpush1.bf16.msra.mxu0 0
    %142 = vmatprep.subr.bf16.mxu0 0
    %143 = vmatpush1.bf16.msra.mxu0 0
    %144 = vmatprep.subr.bf16.mxu0 0
    %145 = vmatpush1.bf16.msra.mxu0 0
    %146 = vmatprep.mubr.bf16.mxu0 0
    %147 = vmatmul.mubr.bf16.gmra.mrb[0].mxu0 %v84
    %v148 = vpop.f32.mrb[0].mxu0
    %v149 = vadd.f32 %v50, %v148
    %v150 = vpop.f32.mrb[0].mxu0
    %v151 = vadd.f32 %v54, %v150
    %v152 = vpop.f32.mrb[0].mxu0
    %v153 = vadd.f32 %v50, %v152
    %v154 = vpop.f32.mrb[0].mxu0
    %v155 = vadd.f32 %v54, %v154
    %156 = vmatprep.mubr.bf16.mxu0 0
    %157 = vmatmul.mubr.bf16.gmra.mrb[0].mxu0 %v87
    %v158 = vpop.f32.mrb[0].mxu0
    %v159 = vadd.f32 %v50, %v158
    %v160 = vpop.f32.mrb[0].mxu0
    %v161 = vadd.f32 %v54, %v160
    %v162 = vpop.f32.mrb[0].mxu0
    %v163 = vadd.f32 %v50, %v162
    %v164 = vpop.f32.mrb[0].mxu0
    %v165 = vadd.f32 %v54, %v164
    %166 = vmatprep.mubr.bf16.mxu0 0
    %167 = vmatmul.mubr.bf16.gmra.mrb[0].mxu0 %v90
    %v168 = vpop.f32.mrb[0].mxu0
    %v169 = vadd.f32 %v50, %v168
    %v170 = vpop.f32.mrb[0].mxu0
    %v171 = vadd.f32 %v54, %v170
    %v172 = vpop.f32.mrb[0].mxu0
    %v173 = vadd.f32 %v50, %v172
    %v174 = vpop.f32.mrb[0].mxu0
    %v175 = vadd.f32 %v54, %v174
    %176 = vmatprep.mubr.bf16.mxu0 0
    %177 = vmatmul.mubr.bf16.gmra.mrb[0].mxu0 %v93
    %v178 = vpop.f32.mrb[0].mxu0
    %v179 = vadd.f32 %v50, %v178
    %v180 = vpop.f32.mrb[0].mxu0
    %v181 = vadd.f32 %v54, %v180
    %v182 = vpop.f32.mrb[0].mxu0
    %v183 = vadd.f32 %v50, %v182
    %v184 = vpop.f32.mrb[0].mxu0
    %v185 = vadd.f32 %v54, %v184
    %186 = vmatprep.mubr.bf16.mxu0 0
    %187 = vmatmul.mubr.bf16.gmra.mrb[0].mxu0 %v96
    %v188 = vpop.f32.mrb[0].mxu0
    %v189 = vadd.f32 %v50, %v188
    %v190 = vpop.f32.mrb[0].mxu0
    %v191 = vadd.f32 %v54, %v190
    %v192 = vpop.f32.mrb[0].mxu0
    %v193 = vadd.f32 %v50, %v192
    %v194 = vpop.f32.mrb[0].mxu0
    %v195 = vadd.f32 %v54, %v194
    %196 = vmatprep.mubr.bf16.mxu0 0
    %197 = vmatmul.mubr.bf16.gmra.mrb[0].mxu0 %v99
    %v198 = vpop.f32.mrb[0].mxu0
    %v199 = vadd.f32 %v50, %v198
    %v200 = vpop.f32.mrb[0].mxu0
    %v201 = vadd.f32 %v54, %v200
    %v202 = vpop.f32.mrb[0].mxu0
    %v203 = vadd.f32 %v50, %v202
    %v204 = vpop.f32.mrb[0].mxu0
    %v205 = vadd.f32 %v54, %v204
    %206 = vmatprep.mubr.bf16.mxu0 0
    %207 = vmatmul.mubr.bf16.gmra.mrb[0].mxu0 %v102
    %v208 = vpop.f32.mrb[0].mxu0
    %v209 = vadd.f32 %v50, %v208
    %v210 = vpop.f32.mrb[0].mxu0
    %v211 = vadd.f32 %v54, %v210
    %v212 = vpop.f32.mrb[0].mxu0
    %v213 = vadd.f32 %v50, %v212
    %v214 = vpop.f32.mrb[0].mxu0
    %v215 = vadd.f32 %v54, %v214
    %216 = vmatprep.mubr.bf16.mxu0 0
    %217 = vmatmul.mubr.bf16.gmra.mrb[0].mxu0 %v105
    %v218 = vpop.f32.mrb[0].mxu0
    %v219 = vadd.f32 %v50, %v218
    %v220 = vpop.f32.mrb[0].mxu0
    %v221 = vadd.f32 %v54, %v220
    %v222 = vpop.f32.mrb[0].mxu0
    %v223 = vadd.f32 %v50, %v222
    %v224 = vpop.f32.mrb[0].mxu0
    %v225 = vadd.f32 %v54, %v224
    %226 = vdwg.mxu0
    %v227 = vmax.f32 %v149, 0.0
    %v228 = vmax.f32 %v151, 0.0
    %v229 = vmax.f32 %v153, 0.0
    %v230 = vmax.f32 %v155, 0.0
    %v231 = vmax.f32 %v159, 0.0
    %v232 = vmax.f32 %v161, 0.0
    %v233 = vmax.f32 %v163, 0.0
    %v234 = vmax.f32 %v165, 0.0
    %v235 = vmax.f32 %v169, 0.0
    %v236 = vmax.f32 %v171, 0.0
    %v237 = vmax.f32 %v173, 0.0
    %v238 = vmax.f32 %v175, 0.0
    %v239 = vmax.f32 %v179, 0.0
    %v240 = vmax.f32 %v181, 0.0
    %v241 = vmax.f32 %v183, 0.0
    %v242 = vmax.f32 %v185, 0.0
    %v243 = vmax.f32 %v189, 0.0
    %v244 = vmax.f32 %v191, 0.0
    %v245 = vmax.f32 %v193, 0.0
    %v246 = vmax.f32 %v195, 0.0
    %v247 = vmax.f32 %v199, 0.0
    %v248 = vmax.f32 %v201, 0.0
    %v249 = vmax.f32 %v203, 0.0
    %v250 = vmax.f32 %v205, 0.0
    %v251 = vmax.f32 %v209, 0.0
    %v252 = vmax.f32 %v211, 0.0
    %v253 = vmax.f32 %v213, 0.0
    %v254 = vmax.f32 %v215, 0.0
    %v255 = vmax.f32 %v219, 0.0
    %v256 = vmax.f32 %v221, 0.0
    %v257 = vmax.f32 %v223, 0.0
    %v258 = vmax.f32 %v225, 0.0
    %259 = vst [vmem:[#allocation2] sm:$0xff] %v227
    %260 = vst [vmem:[#allocation2 + $0x8] sm:$0xff] %v228
    %261 = vst [vmem:[#allocation2 + $0x10] sm:$0xff] %v229
    %262 = vst [vmem:[#allocation2 + $0x18] sm:$0xff] %v230
    %263 = vst [vmem:[#allocation2 + $0x20] sm:$0xff] %v231
    %264 = vst [vmem:[#allocation2 + $0x28] sm:$0xff] %v232
    %265 = vst [vmem:[#allocation2 + $0x30] sm:$0xff] %v233
    %266 = vst [vmem:[#allocation2 + $0x38] sm:$0xff] %v234
    %267 = vst [vmem:[#allocation2 + $0x40] sm:$0xff] %v235
    %268 = vst [vmem:[#allocation2 + $0x48] sm:$0xff] %v236
    %269 = vst [vmem:[#allocation2 + $0x50] sm:$0xff] %v237
    %270 = vst [vmem:[#allocation2 + $0x58] sm:$0xff] %v238
    %271 = vst [vmem:[#allocation2 + $0x60] sm:$0xff] %v239
    %272 = vst [vmem:[#allocation2 + $0x68] sm:$0xff] %v240
    %273 = vst [vmem:[#allocation2 + $0x70] sm:$0xff] %v241
    %274 = vst [vmem:[#allocation2 + $0x78] sm:$0xff] %v242
    %275 = vst [vmem:[#allocation2 + $0x80] sm:$0xff] %v243
    %276 = vst [vmem:[#allocation2 + $0x88] sm:$0xff] %v244
    %277 = vst [vmem:[#allocation2 + $0x90] sm:$0xff] %v245
    %278 = vst [vmem:[#allocation2 + $0x98] sm:$0xff] %v246
    %279 = vst [vmem:[#allocation2 + $0xa0] sm:$0xff] %v247
    %280 = vst [vmem:[#allocation2 + $0xa8] sm:$0xff] %v248
    %281 = vst [vmem:[#allocation2 + $0xb0] sm:$0xff] %v249
    %282 = vst [vmem:[#allocation2 + $0xb8] sm:$0xff] %v250
    %283 = vst [vmem:[#allocation2 + $0xc0] sm:$0xff] %v251
    %284 = vst [vmem:[#allocation2 + $0xc8] sm:$0xff] %v252
    %285 = vst [vmem:[#allocation2 + $0xd0] sm:$0xff] %v253
    %286 = vst [vmem:[#allocation2 + $0xd8] sm:$0xff] %v254
    %287 = vst [vmem:[#allocation2 + $0xe0] sm:$0xff] %v255
    %288 = vst [vmem:[#allocation2 + $0xe8] sm:$0xff] %v256
    %289 = vst [vmem:[#allocation2 + $0xf0] sm:$0xff] %v257
    %290 = vst [vmem:[#allocation2 + $0xf8] sm:$0xff] %v258
    // Predicated region
    $region14: #{tpu_custom_call.1} parent=1 // pred_check
      _
    $region15: #{tpu_custom_call.1} parent=1 // pred_check_branch
      %292 = sbr.rel (0) target = $region17
    $region16: #{tpu_custom_call.1} parent=1 // pred_region
      %s294 = ssub.s32 4096, 4096
      %295 = vsyncadd [#allocation3], %s294
      %s296 = sshll.u32 [#allocation2], 4
      %s297 = int_to_ptr.vmem [resolvable:$true] %s296
      %302 = dma.vmem_to_hbm [thread:$0]  %s297, 4096, %s3, [#allocation3], 256, 256, 16
    $region17: #{tpu_custom_call.1} parent=1 // pred_fallthru
      _
    // Predicated region
    $region18: #{tpu_custom_call.1} parent=1 // pred_check
      _
    $region19: #{tpu_custom_call.1} parent=1 // pred_check_branch
      %304 = sbr.rel (0) target = $region21
    $region20: #{tpu_custom_call.1} parent=1 // pred_region
      %305 = dma.done [#allocation3], 4096
    $region21: #{tpu_custom_call.1} parent=1 // pred_fallthru
      _
    %306 = vsyncpa [#allocation3], 1

</llo_original>
